<compile_context>
chip_gen: v7x
topology: tpu7x:2x2x1
jax: 0.10.0
libtpu: 0.0.40
codegen_flags: <defaults>
</compile_context>

<pallas_src>
import functools

import jax
import jax.numpy as jnp
from jax.experimental import pallas as pl
from jax.experimental.pallas import tpu as pltpu

EPS = 1e-9
TEMP = 0.66


def encoder_a_kernel(x_ref, w1_ref, b1_ref, w2_ref, b2_ref, out_ref, *, zp_dim):
    """Fused 2-layer MLP + std transform. All operands live fully in VMEM."""
    # fc[0]: Linear(2048, H) + ReLU.  x arrives f32; cast to bf16 at the dot only
    # (free VPU cast, hidden under the dominant w1 DMA).  bf16 x bf16 -> f32 MXU.
    h = jnp.dot(x_ref[...].astype(jnp.bfloat16), w1_ref[...],
                preferred_element_type=jnp.float32) + b1_ref[...]
    h = jnp.maximum(h, 0.0)                                          # f32 (B, H)

    # fc[2]: Linear(H, D_pad) + ReLU.  Cast h to bf16 right at the dot only.
    stats = jnp.dot(h.astype(jnp.bfloat16), w2_ref[...],
                    preferred_element_type=jnp.float32) + b2_ref[...]
    stats = jnp.maximum(stats, 0.0)                                  # f32 (B, D_pad)

    # Apply std = sqrt(exp(logvar) + EPS) only on the logvar column range using a
    # full-tile select (no lane-misaligned slices, single lane-dense store).
    # exp() only sees the logvar values (others replaced by 0) so the discarded
    # branch can never overflow to +inf.
    col = jax.lax.broadcasted_iota(jnp.int32, stats.shape, 1)
    is_logvar = jnp.logical_and(col >= zp_dim, col < 2 * zp_dim)
    std_all = jnp.sqrt(jnp.exp(jnp.where(is_logvar, stats, 0.0)) + EPS)
    out_ref[...] = jnp.where(is_logvar, std_all, stats)


def prepare_params(params, zPrivate_dim, zSharedAttr_dim):
    """One-time parameter prep (do this at load time, NOT per forward call).

    Casts the bandwidth-dominant weights to bf16 and zero-pads the second layer
    to a lane-dense 128-multiple output width.  Biases stay f32.
    """
    H = params["w1"].shape[1]
    D = 2 * zPrivate_dim + 2 * sum(zSharedAttr_dim)
    assert params["w2"].shape == (H, D)
    D_pad = pl.cdiv(D, 128) * 128

    w1_bf = params["w1"].astype(jnp.bfloat16)                       # (2048, H)
    b1 = params["b1"][None, :].astype(jnp.float32)                  # (1, H)
    w2_bf = jnp.zeros((H, D_pad), jnp.bfloat16).at[:, :D].set(
        params["w2"].astype(jnp.bfloat16))                          # (H, D_pad)
    b2 = jnp.zeros((1, D_pad), jnp.float32).at[:, :D].set(
        params["b2"][None, :].astype(jnp.float32))                  # (1, D_pad)

    prepared = {"w1_bf": w1_bf, "b1": b1, "w2_bf": w2_bf, "b2": b2,
                "D": D, "D_pad": D_pad, "H": H}
    # Materialize now so no cast/pad work leaks into the forward call.
    jax.block_until_ready(prepared["w1_bf"])
    jax.block_until_ready(prepared["w2_bf"])
    return prepared


@functools.partial(jax.jit, static_argnums=(2, 3))
def encoder_a_forward(x, prepared, zPrivate_dim, zSharedAttr_dim):
    """Returns (muPrivate, stdPrivate, shared_attr_logits_list, temperature).

    muPrivate / stdPrivate carry the PyTorch unsqueeze(0) leading axis: (1, B, zP).
    shared_attr_logits_list[i] is (1, B, 2), matching
    shared_attr_logit[:, :, i*2:(i+1)*2] fed to q.concrete.
    """
    B, F = x.shape
    H = prepared["w1_bf"].shape[1]
    zS = sum(zSharedAttr_dim)
    D = 2 * zPrivate_dim + 2 * zS
    D_pad = prepared["w2_bf"].shape[1]

    kernel = functools.partial(encoder_a_kernel, zp_dim=zPrivate_dim)

    # Advisory cost hint so XLA can overlap this tiny call with its neighbors.
    flops = 2 * B * (F * H + H * D_pad)
    bytes_accessed = (B * F * 4          # x (f32)
                      + F * H * 2        # w1 (bf16)
                      + H * 4            # b1
                      + H * D_pad * 2    # w2 (bf16)
                      + D_pad * 4        # b2
                      + B * D_pad * 4)   # out (f32)
    cost = pl.CostEstimate(flops=flops,
                           transcendentals=2 * B * D_pad,  # exp + sqrt
                           bytes_accessed=bytes_accessed)

    out = pl.pallas_call(
        kernel,
        out_shape=jax.ShapeDtypeStruct((B, D_pad), jnp.float32),
        in_specs=[pl.BlockSpec(memory_space=pltpu.MemorySpace.VMEM)] * 5,
        out_specs=pl.BlockSpec(memory_space=pltpu.MemorySpace.VMEM),
        cost_estimate=cost,
    )(x, prepared["w1_bf"], prepared["b1"], prepared["w2_bf"], prepared["b2"])

    # Wrapper-side slicing (free XLA ops).  PyTorch's stats.unsqueeze(0) -> [None].
    stats = out[None, :, :D]                          # (1, B, D)
    mu = stats[:, :, :zPrivate_dim]                   # (1, B, zP)
    std = stats[:, :, zPrivate_dim:2 * zPrivate_dim]  # kernel already applied sqrt(exp+EPS)
    logits = stats[:, :, 2 * zPrivate_dim:]           # (1, B, 2*sum(zSharedAttr))
    shared_logits = [logits[:, :, 2 * i:2 * (i + 1)] for i in range(zS)]

    # TODO(synk): probtorch Trace construction (q.normal / q.concrete reparameterized
    # sampling + log-prob bookkeeping) has no Pallas equivalent; we return the
    # distribution parameters (mu, std, per-attribute logits, temperature) instead.
    return mu, std, shared_logits, jnp.float32(TEMP)


def kaiming_init_params(key, num_hidden, out_dim):
    """Deterministic Kaiming (He-normal) init, biases zeroed (matches kaiming_init)."""
    k1, k2 = jax.random.split(key)
    w1 = jax.random.normal(k1, (2048, num_hidden), jnp.float32) * jnp.sqrt(2.0 / 2048)
    b1 = jnp.zeros((num_hidden,), jnp.float32)
    w2 = jax.random.normal(k2, (num_hidden, out_dim), jnp.float32) * jnp.sqrt(2.0 / num_hidden)
    b2 = jnp.zeros((out_dim,), jnp.float32)
    return {"w1": w1, "b1": b1, "w2": w2, "b2": b2}


if __name__ == "__main__":
    # Small config consistent with the module: input feature dim is fixed at 2048.
    B = 8
    zPrivate_dim = 16
    zSharedAttr_dim = (2, 3, 4)           # sum = 9 attributes, 2 logits each
    num_hidden = 128
    out_dim = 2 * zPrivate_dim + 2 * sum(zSharedAttr_dim)   # 50

    key = jax.random.PRNGKey(0)
    kx, kp = jax.random.split(key)
    x = jax.random.normal(kx, (B, 2048), jnp.float32)
    params = kaiming_init_params(kp, num_hidden, out_dim)

    # One-time prep at parameter-load time (bf16 cast + lane-dense padding).
    prepared = prepare_params(params, zPrivate_dim, zSharedAttr_dim)

    mu, std, shared_logits, temp = encoder_a_forward(
        x, prepared, zPrivate_dim, zSharedAttr_dim)
    jax.block_until_ready((mu, std, shared_logits))

    # Pure-JAX reference using the SAME bf16 operand casts (kernel ships bf16
    # weights/activations with f32 MXU accumulation, so an f32-weight reference
    # would need much looser tolerances).
    w1_bf = params["w1"].astype(jnp.bfloat16)
    w2_bf = params["w2"].astype(jnp.bfloat16)
    h_ref = jnp.maximum(
        jnp.dot(x.astype(jnp.bfloat16), w1_bf,
                preferred_element_type=jnp.float32) + params["b1"], 0.0)
    stats_ref = jnp.maximum(
        jnp.dot(h_ref.astype(jnp.bfloat16), w2_bf,
                preferred_element_type=jnp.float32) + params["b2"], 0.0)[None]
    mu_ref = stats_ref[:, :, :zPrivate_dim]
    std_ref = jnp.sqrt(jnp.exp(stats_ref[:, :, zPrivate_dim:2 * zPrivate_dim]) + EPS)
    logit_ref = stats_ref[:, :, 2 * zPrivate_dim:]

    assert mu.shape == (1, B, zPrivate_dim)
    assert std.shape == (1, B, zPrivate_dim)
    assert len(shared_logits) == sum(zSharedAttr_dim)
    assert shared_logits[0].shape == (1, B, 2)
    assert jnp.allclose(mu, mu_ref, atol=1e-2, rtol=1e-2)
    assert jnp.allclose(std, std_ref, atol=1e-2, rtol=1e-2)
    assert jnp.allclose(jnp.concatenate(shared_logits, axis=-1), logit_ref,
                        atol=1e-2, rtol=1e-2)

    print("KERNEL_OK")
</pallas_src>

<mosaic_0001>
module attributes {stable_mosaic.version = 11 : i64} {
  func.func @encoder_a_kernel(%arg0: memref<8x2048xf32, #tpu.memory_space<vmem>>, %arg1: memref<2048x128xbf16, #tpu.memory_space<vmem>>, %arg2: memref<1x128xf32, #tpu.memory_space<vmem>>, %arg3: memref<128x128xbf16, #tpu.memory_space<vmem>>, %arg4: memref<1x128xf32, #tpu.memory_space<vmem>>, %arg5: memref<8x128xf32, #tpu.memory_space<vmem>>) attributes {dimension_semantics = [], scalar_prefetch = 0 : i64, scratch_operands = 0 : i64, tpu.core_type = #tpu.core_type<tc>} {
    %c0 = arith.constant 0 : index
    %c0_0 = arith.constant 0 : index
    %0 = vector.load %arg0[%c0, %c0_0] : memref<8x2048xf32, #tpu.memory_space<vmem>>, vector<8x2048xf32>
    %1 = arith.truncf %0 : vector<8x2048xf32> to vector<8x2048xbf16>
    %c0_1 = arith.constant 0 : index
    %c0_2 = arith.constant 0 : index
    %2 = vector.load %arg1[%c0_1, %c0_2] : memref<2048x128xbf16, #tpu.memory_space<vmem>>, vector<2048x128xbf16>
    %cst = arith.constant dense<0.000000e+00> : vector<8x128xf32>
    %3 = tpu.matmul %1, %2, %cst {dimension_numbers = #tpu.dot_dimension_numbers<[1], [0], [0], [1], [0, 0, 1, 1], [], []>} : vector<8x2048xbf16>, vector<2048x128xbf16>, vector<8x128xf32> -> vector<8x128xf32>
    %c0_3 = arith.constant 0 : index
    %c0_4 = arith.constant 0 : index
    %4 = vector.load %arg2[%c0_3, %c0_4] : memref<1x128xf32, #tpu.memory_space<vmem>>, vector<1x128xf32>
    %5 = vector.broadcast %4 : vector<1x128xf32> to vector<8x128xf32>
    %6 = arith.addf %3, %5 : vector<8x128xf32>
    %cst_5 = arith.constant 0.000000e+00 : f32
    %7 = vector.broadcast %cst_5 : f32 to vector<8x128xf32>
    %8 = arith.maximumf %6, %7 : vector<8x128xf32>
    %9 = arith.truncf %8 : vector<8x128xf32> to vector<8x128xbf16>
    %c0_6 = arith.constant 0 : index
    %c0_7 = arith.constant 0 : index
    %10 = vector.load %arg3[%c0_6, %c0_7] : memref<128x128xbf16, #tpu.memory_space<vmem>>, vector<128x128xbf16>
    %cst_8 = arith.constant dense<0.000000e+00> : vector<8x128xf32>
    %11 = tpu.matmul %9, %10, %cst_8 {dimension_numbers = #tpu.dot_dimension_numbers<[1], [0], [0], [1], [0, 0, 1, 1], [], []>} : vector<8x128xbf16>, vector<128x128xbf16>, vector<8x128xf32> -> vector<8x128xf32>
    %c0_9 = arith.constant 0 : index
    %c0_10 = arith.constant 0 : index
    %12 = vector.load %arg4[%c0_9, %c0_10] : memref<1x128xf32, #tpu.memory_space<vmem>>, vector<1x128xf32>
    %13 = vector.broadcast %12 : vector<1x128xf32> to vector<8x128xf32>
    %14 = arith.addf %11, %13 : vector<8x128xf32>
    %cst_11 = arith.constant 0.000000e+00 : f32
    %15 = vector.broadcast %cst_11 : f32 to vector<8x128xf32>
    %16 = arith.maximumf %14, %15 : vector<8x128xf32>
    %17 = tpu.iota {dimensions = array<i32: 1>} : vector<8x128xi32>
    %c16_i32 = arith.constant 16 : i32
    %18 = vector.broadcast %c16_i32 : i32 to vector<8x128xi32>
    %19 = arith.cmpi sge, %17, %18 : vector<8x128xi32>
    %c32_i32 = arith.constant 32 : i32
    %20 = vector.broadcast %c32_i32 : i32 to vector<8x128xi32>
    %21 = arith.cmpi slt, %17, %20 : vector<8x128xi32>
    %22 = arith.andi %19, %21 : vector<8x128xi1>
    %cst_12 = arith.constant 0.000000e+00 : f32
    %23 = vector.broadcast %cst_12 : f32 to vector<8x128xf32>
    %24 = arith.select %22, %16, %23 : vector<8x128xi1>, vector<8x128xf32>
    %25 = math.exp %24 : vector<8x128xf32>
    %cst_13 = arith.constant 9.99999971E-10 : f32
    %26 = vector.broadcast %cst_13 : f32 to vector<8x128xf32>
    %27 = arith.addf %25, %26 : vector<8x128xf32>
    %28 = math.sqrt %27 : vector<8x128xf32>
    %29 = arith.select %22, %28, %16 : vector<8x128xi1>, vector<8x128xf32>
    %c0_14 = arith.constant 0 : index
    %c0_15 = arith.constant 0 : index
    %30 = vector.load %arg5[%c0_14, %c0_15] : memref<8x128xf32, #tpu.memory_space<vmem>>, vector<8x128xf32>
    tpu.vector_store %arg5[%c0_14, %c0_15], %29 {strides = array<i32>} : memref<8x128xf32, #tpu.memory_space<vmem>>, vector<8x128xf32>,
    return
  }
}

</mosaic_0001>

<llo_original>
// kernel: encoder_a_forward.1
$region0: #{encoder_a_forward.1}
  #allocation0 [shape = 'u32[]', space=smem, size = 0x4, offset = 0x4, fixed_abs, tag = 'smem constant byte address 0x4 - core index']
  #allocation1 [shape = 'u32[144,128]{1,0:T(1,128)}', space=vmem, size = 0x12000, scoped, tag = 'internal scratch']
  %s0 = inlined_call_operand.hbm [shape: f32[8,2048], index: 0, kind: input, shape index: {}]
  %s1 = inlined_call_operand.hbm [shape: bf16[2048,128], index: 1, kind: input, shape index: {}]
  %s2 = inlined_call_operand.vmem [shape: f32[1,128], index: 2, kind: input, shape index: {}]
  %s3 = inlined_call_operand.hbm [shape: bf16[128,128], index: 3, kind: input, shape index: {}]
  %s4 = inlined_call_operand.vmem [shape: f32[1,128], index: 4, kind: input, shape index: {}]
  %s5 = inlined_call_operand.vmem [shape: f32[8,128], index: 5, kind: output, shape index: {}]
  %s6 = sld [smem:[#allocation0]]
  $region42: #{encoder_a_forward.1} parent=0
    _
  %s8 = ssub.s32 1, %s6
  %s9 = scalar_select 0, %s8, %s6
  $region1: #{encoder_a_forward.1} parent=0
    #allocation2 [shape = 'u8[65536]{0}', space=vmem, size = 0x10000, scoped, tag = 'input window, operand 0, single buffered']
    #allocation3 [shape = 's32[1]{0}', space=sflag, size = 0x4, scoped, tag = 'scoped memory for encoder_a_forward.1']
    #allocation4 [shape = 'u8[524288]{0}', space=vmem, size = 0x80000, scoped, tag = 'input window, operand 1, single buffered']
    #allocation5 [shape = 's32[1]{0}', space=sflag, size = 0x4, scoped, tag = 'scoped memory for encoder_a_forward.1']
    #allocation6 [shape = 'u8[32768]{0}', space=vmem, size = 0x8000, scoped, tag = 'input window, operand 3, single buffered']
    %10 = vsyncpa [#allocation3], 0
    %11 = vsyncpa [#allocation5], 0
    // Predicated region
    $region2: #{encoder_a_forward.1} parent=1 // pred_check
      _
    $region3: #{encoder_a_forward.1} parent=1 // pred_check_branch
      %13 = sbr.rel (0) target = $region5
    $region4: #{encoder_a_forward.1} parent=1 // pred_region
      %s15 = ssub.s32 2048, 2048
      %16 = vsyncadd [#allocation3], %s15
      %s18 = sshll.u32 [#allocation2], 4
      %s19 = int_to_ptr.vmem [resolvable:$true] %s18
      %21 = dma.hbm_to_vmem [thread:$0]  %s0, 2048, %s19, [#allocation3]
    $region5: #{encoder_a_forward.1} parent=1 // pred_fallthru
      _
    // Predicated region
    $region6: #{encoder_a_forward.1} parent=1 // pred_check
      _
    $region7: #{encoder_a_forward.1} parent=1 // pred_check_branch
      %23 = sbr.rel (0) target = $region9
    $region8: #{encoder_a_forward.1} parent=1 // pred_region
      %s25 = ssub.s32 16384, 16384
      %26 = vsyncadd [#allocation5], %s25
      %s27 = sshll.u32 [#allocation4], 4
      %s28 = int_to_ptr.vmem [resolvable:$true] %s27
      %33 = dma.hbm_to_vmem [thread:$0]  %s1, 16384, %s28, [#allocation5], 64, 64, 4
    $region9: #{encoder_a_forward.1} parent=1 // pred_fallthru
      _
    // Predicated region
    $region10: #{encoder_a_forward.1} parent=1 // pred_check
      _
    $region11: #{encoder_a_forward.1} parent=1 // pred_check_branch
      %35 = sbr.rel (0) target = $region13
    $region12: #{encoder_a_forward.1} parent=1 // pred_region
      _
    $region13: #{encoder_a_forward.1} parent=1 // pred_fallthru
      _
    // Predicated region
    $region14: #{encoder_a_forward.1} parent=1 // pred_check
      _
    $region15: #{encoder_a_forward.1} parent=1 // pred_check_branch
      %37 = sbr.rel (0) target = $region17
    $region16: #{encoder_a_forward.1} parent=1 // pred_region
      %s39 = ssub.s32 1024, 1024
      %40 = vsyncadd [#allocation5], %s39
      %s41 = sshll.u32 [#allocation6], 4
      %s42 = int_to_ptr.vmem [resolvable:$true] %s41
      %47 = dma.hbm_to_vmem [thread:$0]  %s3, 1024, %s42, [#allocation5], 64, 64, 4
    $region17: #{encoder_a_forward.1} parent=1 // pred_fallthru
      _
    // Predicated region
    $region18: #{encoder_a_forward.1} parent=1 // pred_check
      _
    $region19: #{encoder_a_forward.1} parent=1 // pred_check_branch
      %49 = sbr.rel (0) target = $region21
    $region20: #{encoder_a_forward.1} parent=1 // pred_region
      _
    $region21: #{encoder_a_forward.1} parent=1 // pred_fallthru
      _
    // Predicated region
    $region22: #{encoder_a_forward.1} parent=1 // pred_check
      _
    $region23: #{encoder_a_forward.1} parent=1 // pred_check_branch
      %51 = sbr.rel (0) target = $region25
    $region24: #{encoder_a_forward.1} parent=1 // pred_region
      %52 = dma.done [#allocation3], 2048
    $region25: #{encoder_a_forward.1} parent=1 // pred_fallthru
      _
    // Predicated region
    $region26: #{encoder_a_forward.1} parent=1 // pred_check
      _
    $region27: #{encoder_a_forward.1} parent=1 // pred_check_branch
      %54 = sbr.rel (0) target = $region29
    $region28: #{encoder_a_forward.1} parent=1 // pred_region
      %55 = dma.done [#allocation5], 16384
    $region29: #{encoder_a_forward.1} parent=1 // pred_fallthru
      _
    // Predicated region
    $region30: #{encoder_a_forward.1} parent=1 // pred_check
      _
    $region31: #{encoder_a_forward.1} parent=1 // pred_check_branch
      %57 = sbr.rel (0) target = $region33
    $region32: #{encoder_a_forward.1} parent=1 // pred_region
      %58 = dma.done [#allocation5], 1024
    $region33: #{encoder_a_forward.1} parent=1 // pred_fallthru
      _
    %v60 = vld [vmem:[#allocation2] sm:$0xff]
    %v61 = vld [vmem:[#allocation2 + $0x8] sm:$0xff]
    %v62 = vld [vmem:[#allocation2 + $0x10] sm:$0xff]
    %v63 = vld [vmem:[#allocation2 + $0x18] sm:$0xff]
    %v64 = vld [vmem:[#allocation2 + $0x20] sm:$0xff]
    %v65 = vld [vmem:[#allocation2 + $0x28] sm:$0xff]
    %v66 = vld [vmem:[#allocation2 + $0x30] sm:$0xff]
    %v67 = vld [vmem:[#allocation2 + $0x38] sm:$0xff]
    %v68 = vld [vmem:[#allocation2 + $0x40] sm:$0xff]
    %v69 = vld [vmem:[#allocation2 + $0x48] sm:$0xff]
    %v70 = vld [vmem:[#allocation2 + $0x50] sm:$0xff]
    %v71 = vld [vmem:[#allocation2 + $0x58] sm:$0xff]
    %v72 = vld [vmem:[#allocation2 + $0x60] sm:$0xff]
    %v73 = vld [vmem:[#allocation2 + $0x68] sm:$0xff]
    %v74 = vld [vmem:[#allocation2 + $0x70] sm:$0xff]
    %v75 = vld [vmem:[#allocation2 + $0x78] sm:$0xff]
    %v76 = vpack.c.bf16 %v60, %v60
    %v77 = vpack.c.bf16 %v61, %v61
    %v78 = vpack.c.bf16 %v62, %v62
    %v79 = vpack.c.bf16 %v63, %v63
    %v80 = vpack.c.bf16 %v64, %v64
    %v81 = vpack.c.bf16 %v65, %v65
    %v82 = vpack.c.bf16 %v66, %v66
    %v83 = vpack.c.bf16 %v67, %v67
    %v84 = vpack.c.bf16 %v68, %v68
    %v85 = vpack.c.bf16 %v69, %v69
    %v86 = vpack.c.bf16 %v70, %v70
    %v87 = vpack.c.bf16 %v71, %v71
    %v88 = vpack.c.bf16 %v72, %v72
    %v89 = vpack.c.bf16 %v73, %v73
    %v90 = vpack.c.bf16 %v74, %v74
    %v91 = vpack.c.bf16 %v75, %v75
    %v92 = vld [vmem:[#allocation4] sm:$0xf]
    %v93 = vld [vmem:[#allocation4 + $0x4] sm:$0xf]
    %v94 = vld [vmem:[#allocation4 + $0x8] sm:$0xf]
    %v95 = vld [vmem:[#allocation4 + $0xc] sm:$0xf]
    %v96 = vld [vmem:[#allocation4 + $0x10] sm:$0xf]
    %v97 = vld [vmem:[#allocation4 + $0x14] sm:$0xf]
    %v98 = vld [vmem:[#allocation4 + $0x18] sm:$0xf]
    %v99 = vld [vmem:[#allocation4 + $0x1c] sm:$0xf]
    %v100 = vld [vmem:[#allocation4 + $0x20] sm:$0xf]
    %v101 = vld [vmem:[#allocation4 + $0x24] sm:$0xf]
    %v102 = vld [vmem:[#allocation4 + $0x28] sm:$0xf]
    %v103 = vld [vmem:[#allocation4 + $0x2c] sm:$0xf]
    %v104 = vld [vmem:[#allocation4 + $0x30] sm:$0xf]
    %v105 = vld [vmem:[#allocation4 + $0x34] sm:$0xf]
    %v106 = vld [vmem:[#allocation4 + $0x38] sm:$0xf]
    %v107 = vld [vmem:[#allocation4 + $0x3c] sm:$0xf]
    %v108 = vld [vmem:[#allocation4 + $0x40] sm:$0xf]
    %v109 = vld [vmem:[#allocation4 + $0x44] sm:$0xf]
    %v110 = vld [vmem:[#allocation4 + $0x48] sm:$0xf]
    %v111 = vld [vmem:[#allocation4 + $0x4c] sm:$0xf]
    %v112 = vld [vmem:[#allocation4 + $0x50] sm:$0xf]
    %v113 = vld [vmem:[#allocation4 + $0x54] sm:$0xf]
    %v114 = vld [vmem:[#allocation4 + $0x58] sm:$0xf]
    %v115 = vld [vmem:[#allocation4 + $0x5c] sm:$0xf]
    %v116 = vld [vmem:[#allocation4 + $0x60] sm:$0xf]
    %v117 = vld [vmem:[#allocation4 + $0x64] sm:$0xf]
    %v118 = vld [vmem:[#allocation4 + $0x68] sm:$0xf]
    %v119 = vld [vmem:[#allocation4 + $0x6c] sm:$0xf]
    %v120 = vld [vmem:[#allocation4 + $0x70] sm:$0xf]
    %v121 = vld [vmem:[#allocation4 + $0x74] sm:$0xf]
    %v122 = vld [vmem:[#allocation4 + $0x78] sm:$0xf]
    %v123 = vld [vmem:[#allocation4 + $0x7c] sm:$0xf]
    %v124 = vld [vmem:[#allocation4 + $0x80] sm:$0xf]
    %v125 = vld [vmem:[#allocation4 + $0x84] sm:$0xf]
    %v126 = vld [vmem:[#allocation4 + $0x88] sm:$0xf]
    %v127 = vld [vmem:[#allocation4 + $0x8c] sm:$0xf]
    %v128 = vld [vmem:[#allocation4 + $0x90] sm:$0xf]
    %v129 = vld [vmem:[#allocation4 + $0x94] sm:$0xf]
    %v130 = vld [vmem:[#allocation4 + $0x98] sm:$0xf]
    %v131 = vld [vmem:[#allocation4 + $0x9c] sm:$0xf]
    %v132 = vld [vmem:[#allocation4 + $0xa0] sm:$0xf]
    %v133 = vld [vmem:[#allocation4 + $0xa4] sm:$0xf]
    %v134 = vld [vmem:[#allocation4 + $0xa8] sm:$0xf]
    %v135 = vld [vmem:[#allocation4 + $0xac] sm:$0xf]
    %v136 = vld [vmem:[#allocation4 + $0xb0] sm:$0xf]
    %v137 = vld [vmem:[#allocation4 + $0xb4] sm:$0xf]
    %v138 = vld [vmem:[#allocation4 + $0xb8] sm:$0xf]
    %v139 = vld [vmem:[#allocation4 + $0xbc] sm:$0xf]
    %v140 = vld [vmem:[#allocation4 + $0xc0] sm:$0xf]
    %v141 = vld [vmem:[#allocation4 + $0xc4] sm:$0xf]
    %v142 = vld [vmem:[#allocation4 + $0xc8] sm:$0xf]
    %v143 = vld [vmem:[#allocation4 + $0xcc] sm:$0xf]
    %v144 = vld [vmem:[#allocation4 + $0xd0] sm:$0xf]
    %v145 = vld [vmem:[#allocation4 + $0xd4] sm:$0xf]
    %v146 = vld [vmem:[#allocation4 + $0xd8] sm:$0xf]
    %v147 = vld [vmem:[#allocation4 + $0xdc] sm:$0xf]
    %v148 = vld [vmem:[#allocation4 + $0xe0] sm:$0xf]
    %v149 = vld [vmem:[#allocation4 + $0xe4] sm:$0xf]
    %v150 = vld [vmem:[#allocation4 + $0xe8] sm:$0xf]
    %v151 = vld [vmem:[#allocation4 + $0xec] sm:$0xf]
    %v152 = vld [vmem:[#allocation4 + $0xf0] sm:$0xf]
    %v153 = vld [vmem:[#allocation4 + $0xf4] sm:$0xf]
    %v154 = vld [vmem:[#allocation4 + $0xf8] sm:$0xf]
    %v155 = vld [vmem:[#allocation4 + $0xfc] sm:$0xf]
    %v156 = vld [vmem:[#allocation4 + $0x100] sm:$0xf]
    %v157 = vld [vmem:[#allocation4 + $0x104] sm:$0xf]
    %v158 = vld [vmem:[#allocation4 + $0x108] sm:$0xf]
    %v159 = vld [vmem:[#allocation4 + $0x10c] sm:$0xf]
    %v160 = vld [vmem:[#allocation4 + $0x110] sm:$0xf]
    %v161 = vld [vmem:[#allocation4 + $0x114] sm:$0xf]
    %v162 = vld [vmem:[#allocation4 + $0x118] sm:$0xf]
    %v163 = vld [vmem:[#allocation4 + $0x11c] sm:$0xf]
    %v164 = vld [vmem:[#allocation4 + $0x120] sm:$0xf]
    %v165 = vld [vmem:[#allocation4 + $0x124] sm:$0xf]
    %v166 = vld [vmem:[#allocation4 + $0x128] sm:$0xf]
    %v167 = vld [vmem:[#allocation4 + $0x12c] sm:$0xf]
    %v168 = vld [vmem:[#allocation4 + $0x130] sm:$0xf]
    %v169 = vld [vmem:[#allocation4 + $0x134] sm:$0xf]
    %v170 = vld [vmem:[#allocation4 + $0x138] sm:$0xf]
    %v171 = vld [vmem:[#allocation4 + $0x13c] sm:$0xf]
    %v172 = vld [vmem:[#allocation4 + $0x140] sm:$0xf]
    %v173 = vld [vmem:[#allocation4 + $0x144] sm:$0xf]
    %v174 = vld [vmem:[#allocation4 + $0x148] sm:$0xf]
    %v175 = vld [vmem:[#allocation4 + $0x14c] sm:$0xf]
    %v176 = vld [vmem:[#allocation4 + $0x150] sm:$0xf]
    %v177 = vld [vmem:[#allocation4 + $0x154] sm:$0xf]
    %v178 = vld [vmem:[#allocation4 + $0x158] sm:$0xf]
    %v179 = vld [vmem:[#allocation4 + $0x15c] sm:$0xf]
    %v180 = vld [vmem:[#allocation4 + $0x160] sm:$0xf]
    %v181 = vld [vmem:[#allocation4 + $0x164] sm:$0xf]
    %v182 = vld [vmem:[#allocation4 + $0x168] sm:$0xf]
    %v183 = vld [vmem:[#allocation4 + $0x16c] sm:$0xf]
    %v184 = vld [vmem:[#allocation4 + $0x170] sm:$0xf]
    %v185 = vld [vmem:[#allocation4 + $0x174] sm:$0xf]
    %v186 = vld [vmem:[#allocation4 + $0x178] sm:$0xf]
    %v187 = vld [vmem:[#allocation4 + $0x17c] sm:$0xf]
    %v188 = vld [vmem:[#allocation4 + $0x180] sm:$0xf]
    %v189 = vld [vmem:[#allocation4 + $0x184] sm:$0xf]
    %v190 = vld [vmem:[#allocation4 + $0x188] sm:$0xf]
    %v191 = vld [vmem:[#allocation4 + $0x18c] sm:$0xf]
    %v192 = vld [vmem:[#allocation4 + $0x190] sm:$0xf]
    %v193 = vld [vmem:[#allocation4 + $0x194] sm:$0xf]
    %v194 = vld [vmem:[#allocation4 + $0x198] sm:$0xf]
    %v195 = vld [vmem:[#allocation4 + $0x19c] sm:$0xf]
    %v196 = vld [vmem:[#allocation4 + $0x1a0] sm:$0xf]
    %v197 = vld [vmem:[#allocation4 + $0x1a4] sm:$0xf]
    %v198 = vld [vmem:[#allocation4 + $0x1a8] sm:$0xf]
    %v199 = vld [vmem:[#allocation4 + $0x1ac] sm:$0xf]
    %v200 = vld [vmem:[#allocation4 + $0x1b0] sm:$0xf]
    %v201 = vld [vmem:[#allocation4 + $0x1b4] sm:$0xf]
    %v202 = vld [vmem:[#allocation4 + $0x1b8] sm:$0xf]
    %v203 = vld [vmem:[#allocation4 + $0x1bc] sm:$0xf]
    %v204 = vld [vmem:[#allocation4 + $0x1c0] sm:$0xf]
    %v205 = vld [vmem:[#allocation4 + $0x1c4] sm:$0xf]
    %v206 = vld [vmem:[#allocation4 + $0x1c8] sm:$0xf]
    %v207 = vld [vmem:[#allocation4 + $0x1cc] sm:$0xf]
    %v208 = vld [vmem:[#allocation4 + $0x1d0] sm:$0xf]
    %v209 = vld [vmem:[#allocation4 + $0x1d4] sm:$0xf]
    %v210 = vld [vmem:[#allocation4 + $0x1d8] sm:$0xf]
    %v211 = vld [vmem:[#allocation4 + $0x1dc] sm:$0xf]
    %v212 = vld [vmem:[#allocation4 + $0x1e0] sm:$0xf]
    %v213 = vld [vmem:[#allocation4 + $0x1e4] sm:$0xf]
    %v214 = vld [vmem:[#allocation4 + $0x1e8] sm:$0xf]
    %v215 = vld [vmem:[#allocation4 + $0x1ec] sm:$0xf]
    %v216 = vld [vmem:[#allocation4 + $0x1f0] sm:$0xf]
    %v217 = vld [vmem:[#allocation4 + $0x1f4] sm:$0xf]
    %v218 = vld [vmem:[#allocation4 + $0x1f8] sm:$0xf]
    %v219 = vld [vmem:[#allocation4 + $0x1fc] sm:$0xf]
    %v220 = vld [vmem:[#allocation4 + $0x200] sm:$0xf]
    %v221 = vld [vmem:[#allocation4 + $0x204] sm:$0xf]
    %v222 = vld [vmem:[#allocation4 + $0x208] sm:$0xf]
    %v223 = vld [vmem:[#allocation4 + $0x20c] sm:$0xf]
    %v224 = vld [vmem:[#allocation4 + $0x210] sm:$0xf]
    %v225 = vld [vmem:[#allocation4 + $0x214] sm:$0xf]
    %v226 = vld [vmem:[#allocation4 + $0x218] sm:$0xf]
    %v227 = vld [vmem:[#allocation4 + $0x21c] sm:$0xf]
    %v228 = vld [vmem:[#allocation4 + $0x220] sm:$0xf]
    %v229 = vld [vmem:[#allocation4 + $0x224] sm:$0xf]
    %v230 = vld [vmem:[#allocation4 + $0x228] sm:$0xf]
    %v231 = vld [vmem:[#allocation4 + $0x22c] sm:$0xf]
    %v232 = vld [vmem:[#allocation4 + $0x230] sm:$0xf]
    %v233 = vld [vmem:[#allocation4 + $0x234] sm:$0xf]
    %v234 = vld [vmem:[#allocation4 + $0x238] sm:$0xf]
    %v235 = vld [vmem:[#allocation4 + $0x23c] sm:$0xf]
    %v236 = vld [vmem:[#allocation4 + $0x240] sm:$0xf]
    %v237 = vld [vmem:[#allocation4 + $0x244] sm:$0xf]
    %v238 = vld [vmem:[#allocation4 + $0x248] sm:$0xf]
    %v239 = vld [vmem:[#allocation4 + $0x24c] sm:$0xf]
    %v240 = vld [vmem:[#allocation4 + $0x250] sm:$0xf]
    %v241 = vld [vmem:[#allocation4 + $0x254] sm:$0xf]
    %v242 = vld [vmem:[#allocation4 + $0x258] sm:$0xf]
    %v243 = vld [vmem:[#allocation4 + $0x25c] sm:$0xf]
    %v244 = vld [vmem:[#allocation4 + $0x260] sm:$0xf]
    %v245 = vld [vmem:[#allocation4 + $0x264] sm:$0xf]
    %v246 = vld [vmem:[#allocation4 + $0x268] sm:$0xf]
    %v247 = vld [vmem:[#allocation4 + $0x26c] sm:$0xf]
    %v248 = vld [vmem:[#allocation4 + $0x270] sm:$0xf]
    %v249 = vld [vmem:[#allocation4 + $0x274] sm:$0xf]
    %v250 = vld [vmem:[#allocation4 + $0x278] sm:$0xf]
    %v251 = vld [vmem:[#allocation4 + $0x27c] sm:$0xf]
    %v252 = vld [vmem:[#allocation4 + $0x280] sm:$0xf]
    %v253 = vld [vmem:[#allocation4 + $0x284] sm:$0xf]
    %v254 = vld [vmem:[#allocation4 + $0x288] sm:$0xf]
    %v255 = vld [vmem:[#allocation4 + $0x28c] sm:$0xf]
    %v256 = vld [vmem:[#allocation4 + $0x290] sm:$0xf]
    %v257 = vld [vmem:[#allocation4 + $0x294] sm:$0xf]
    %v258 = vld [vmem:[#allocation4 + $0x298] sm:$0xf]
    %v259 = vld [vmem:[#allocation4 + $0x29c] sm:$0xf]
    %v260 = vld [vmem:[#allocation4 + $0x2a0] sm:$0xf]
    %v261 = vld [vmem:[#allocation4 + $0x2a4] sm:$0xf]
    %v262 = vld [vmem:[#allocation4 + $0x2a8] sm:$0xf]
    %v263 = vld [vmem:[#allocation4 + $0x2ac] sm:$0xf]
    %v264 = vld [vmem:[#allocation4 + $0x2b0] sm:$0xf]
    %v265 = vld [vmem:[#allocation4 + $0x2b4] sm:$0xf]
    %v266 = vld [vmem:[#allocation4 + $0x2b8] sm:$0xf]
    %v267 = vld [vmem:[#allocation4 + $0x2bc] sm:$0xf]
    %v268 = vld [vmem:[#allocation4 + $0x2c0] sm:$0xf]
    %v269 = vld [vmem:[#allocation4 + $0x2c4] sm:$0xf]
    %v270 = vld [vmem:[#allocation4 + $0x2c8] sm:$0xf]
    %v271 = vld [vmem:[#allocation4 + $0x2cc] sm:$0xf]
    %v272 = vld [vmem:[#allocation4 + $0x2d0] sm:$0xf]
    %v273 = vld [vmem:[#allocation4 + $0x2d4] sm:$0xf]
    %v274 = vld [vmem:[#allocation4 + $0x2d8] sm:$0xf]
    %v275 = vld [vmem:[#allocation4 + $0x2dc] sm:$0xf]
    %v276 = vld [vmem:[#allocation4 + $0x2e0] sm:$0xf]
    %v277 = vld [vmem:[#allocation4 + $0x2e4] sm:$0xf]
    %v278 = vld [vmem:[#allocation4 + $0x2e8] sm:$0xf]
    %v279 = vld [vmem:[#allocation4 + $0x2ec] sm:$0xf]
    %v280 = vld [vmem:[#allocation4 + $0x2f0] sm:$0xf]
    %v281 = vld [vmem:[#allocation4 + $0x2f4] sm:$0xf]
    %v282 = vld [vmem:[#allocation4 + $0x2f8] sm:$0xf]
    %v283 = vld [vmem:[#allocation4 + $0x2fc] sm:$0xf]
    %v284 = vld [vmem:[#allocation4 + $0x300] sm:$0xf]
    %v285 = vld [vmem:[#allocation4 + $0x304] sm:$0xf]
    %v286 = vld [vmem:[#allocation4 + $0x308] sm:$0xf]
    %v287 = vld [vmem:[#allocation4 + $0x30c] sm:$0xf]
    %v288 = vld [vmem:[#allocation4 + $0x310] sm:$0xf]
    %v289 = vld [vmem:[#allocation4 + $0x314] sm:$0xf]
    %v290 = vld [vmem:[#allocation4 + $0x318] sm:$0xf]
    %v291 = vld [vmem:[#allocation4 + $0x31c] sm:$0xf]
    %v292 = vld [vmem:[#allocation4 + $0x320] sm:$0xf]
    %v293 = vld [vmem:[#allocation4 + $0x324] sm:$0xf]
    %v294 = vld [vmem:[#allocation4 + $0x328] sm:$0xf]
    %v295 = vld [vmem:[#allocation4 + $0x32c] sm:$0xf]
    %v296 = vld [vmem:[#allocation4 + $0x330] sm:$0xf]
    %v297 = vld [vmem:[#allocation4 + $0x334] sm:$0xf]
    %v298 = vld [vmem:[#allocation4 + $0x338] sm:$0xf]
    %v299 = vld [vmem:[#allocation4 + $0x33c] sm:$0xf]
    %v300 = vld [vmem:[#allocation4 + $0x340] sm:$0xf]
    %v301 = vld [vmem:[#allocation4 + $0x344] sm:$0xf]
    %v302 = vld [vmem:[#allocation4 + $0x348] sm:$0xf]
    %v303 = vld [vmem:[#allocation4 + $0x34c] sm:$0xf]
    %v304 = vld [vmem:[#allocation4 + $0x350] sm:$0xf]
    %v305 = vld [vmem:[#allocation4 + $0x354] sm:$0xf]
    %v306 = vld [vmem:[#allocation4 + $0x358] sm:$0xf]
    %v307 = vld [vmem:[#allocation4 + $0x35c] sm:$0xf]
    %v308 = vld [vmem:[#allocation4 + $0x360] sm:$0xf]
    %v309 = vld [vmem:[#allocation4 + $0x364] sm:$0xf]
    %v310 = vld [vmem:[#allocation4 + $0x368] sm:$0xf]
    %v311 = vld [vmem:[#allocation4 + $0x36c] sm:$0xf]
    %v312 = vld [vmem:[#allocation4 + $0x370] sm:$0xf]
    %v313 = vld [vmem:[#allocation4 + $0x374] sm:$0xf]
    %v314 = vld [vmem:[#allocation4 + $0x378] sm:$0xf]
    %v315 = vld [vmem:[#allocation4 + $0x37c] sm:$0xf]
    %v316 = vld [vmem:[#allocation4 + $0x380] sm:$0xf]
    %v317 = vld [vmem:[#allocation4 + $0x384] sm:$0xf]
    %v318 = vld [vmem:[#allocation4 + $0x388] sm:$0xf]
    %v319 = vld [vmem:[#allocation4 + $0x38c] sm:$0xf]
    %v320 = vld [vmem:[#allocation4 + $0x390] sm:$0xf]
    %v321 = vld [vmem:[#allocation4 + $0x394] sm:$0xf]
    %v322 = vld [vmem:[#allocation4 + $0x398] sm:$0xf]
    %v323 = vld [vmem:[#allocation4 + $0x39c] sm:$0xf]
    %v324 = vld [vmem:[#allocation4 + $0x3a0] sm:$0xf]
    %v325 = vld [vmem:[#allocation4 + $0x3a4] sm:$0xf]
    %v326 = vld [vmem:[#allocation4 + $0x3a8] sm:$0xf]
    %v327 = vld [vmem:[#allocation4 + $0x3ac] sm:$0xf]
    %v328 = vld [vmem:[#allocation4 + $0x3b0] sm:$0xf]
    %v329 = vld [vmem:[#allocation4 + $0x3b4] sm:$0xf]
    %v330 = vld [vmem:[#allocation4 + $0x3b8] sm:$0xf]
    %v331 = vld [vmem:[#allocation4 + $0x3bc] sm:$0xf]
    %v332 = vld [vmem:[#allocation4 + $0x3c0] sm:$0xf]
    %v333 = vld [vmem:[#allocation4 + $0x3c4] sm:$0xf]
    %v334 = vld [vmem:[#allocation4 + $0x3c8] sm:$0xf]
    %v335 = vld [vmem:[#allocation4 + $0x3cc] sm:$0xf]
    %v336 = vld [vmem:[#allocation4 + $0x3d0] sm:$0xf]
    %v337 = vld [vmem:[#allocation4 + $0x3d4] sm:$0xf]
    %v338 = vld [vmem:[#allocation4 + $0x3d8] sm:$0xf]
    %v339 = vld [vmem:[#allocation4 + $0x3dc] sm:$0xf]
    %v340 = vld [vmem:[#allocation4 + $0x3e0] sm:$0xf]
    %v341 = vld [vmem:[#allocation4 + $0x3e4] sm:$0xf]
    %v342 = vld [vmem:[#allocation4 + $0x3e8] sm:$0xf]
    %v343 = vld [vmem:[#allocation4 + $0x3ec] sm:$0xf]
    %v344 = vld [vmem:[#allocation4 + $0x3f0] sm:$0xf]
    %v345 = vld [vmem:[#allocation4 + $0x3f4] sm:$0xf]
    %v346 = vld [vmem:[#allocation4 + $0x3f8] sm:$0xf]
    %v347 = vld [vmem:[#allocation4 + $0x3fc] sm:$0xf]
    %v348 = vld [vmem:[%s2] sm:$0x1]
    %v350 = vlaneseq
    %v351 = vshrl.u32 %v350, 7
    %v352 = vsub.s32 0, %v351
    %v353 = vrot.slane %v348, %v352
    %v611 = vunpack.c.l.b16 %v92
    %v612 = vunpack.c.l.b16 %v93
    %v613 = vunpack.c.l.b16 %v94
    %v614 = vunpack.c.l.b16 %v95
    %v615 = vunpack.c.l.b16 %v96
    %v616 = vunpack.c.l.b16 %v97
    %v617 = vunpack.c.l.b16 %v98
    %v618 = vunpack.c.l.b16 %v99
    %v619 = vunpack.c.l.b16 %v100
    %v620 = vunpack.c.l.b16 %v101
    %v621 = vunpack.c.l.b16 %v102
    %v622 = vunpack.c.l.b16 %v103
    %v623 = vunpack.c.l.b16 %v104
    %v624 = vunpack.c.l.b16 %v105
    %v625 = vunpack.c.l.b16 %v106
    %v626 = vunpack.c.l.b16 %v107
    %v627 = vunpack.c.l.b16 %v108
    %v628 = vunpack.c.l.b16 %v109
    %v629 = vunpack.c.l.b16 %v110
    %v630 = vunpack.c.l.b16 %v111
    %v631 = vunpack.c.l.b16 %v112
    %v632 = vunpack.c.l.b16 %v113
    %v633 = vunpack.c.l.b16 %v114
    %v634 = vunpack.c.l.b16 %v115
    %v635 = vunpack.c.l.b16 %v116
    %v636 = vunpack.c.l.b16 %v117
    %v637 = vunpack.c.l.b16 %v118
    %v638 = vunpack.c.l.b16 %v119
    %v639 = vunpack.c.l.b16 %v120
    %v640 = vunpack.c.l.b16 %v121
    %v641 = vunpack.c.l.b16 %v122
    %v642 = vunpack.c.l.b16 %v123
    %v643 = vunpack.c.l.b16 %v124
    %v644 = vunpack.c.l.b16 %v125
    %v645 = vunpack.c.l.b16 %v126
    %v646 = vunpack.c.l.b16 %v127
    %v647 = vunpack.c.l.b16 %v128
    %v648 = vunpack.c.l.b16 %v129
    %v649 = vunpack.c.l.b16 %v130
    %v650 = vunpack.c.l.b16 %v131
    %v651 = vunpack.c.l.b16 %v132
    %v652 = vunpack.c.l.b16 %v133
    %v653 = vunpack.c.l.b16 %v134
    %v654 = vunpack.c.l.b16 %v135
    %v655 = vunpack.c.l.b16 %v136
    %v656 = vunpack.c.l.b16 %v137
    %v657 = vunpack.c.l.b16 %v138
    %v658 = vunpack.c.l.b16 %v139
    %v659 = vunpack.c.l.b16 %v140
    %v660 = vunpack.c.l.b16 %v141
    %v661 = vunpack.c.l.b16 %v142
    %v662 = vunpack.c.l.b16 %v143
    %v663 = vunpack.c.l.b16 %v144
    %v664 = vunpack.c.l.b16 %v145
    %v665 = vunpack.c.l.b16 %v146
    %v666 = vunpack.c.l.b16 %v147
    %v667 = vunpack.c.l.b16 %v148
    %v668 = vunpack.c.l.b16 %v149
    %v669 = vunpack.c.l.b16 %v150
    %v670 = vunpack.c.l.b16 %v151
    %v671 = vunpack.c.l.b16 %v152
    %v672 = vunpack.c.l.b16 %v153
    %v673 = vunpack.c.l.b16 %v154
    %v674 = vunpack.c.l.b16 %v155
    %v675 = vunpack.c.l.b16 %v156
    %v676 = vunpack.c.l.b16 %v157
    %v677 = vunpack.c.l.b16 %v158
    %v678 = vunpack.c.l.b16 %v159
    %v679 = vunpack.c.l.b16 %v160
    %v680 = vunpack.c.l.b16 %v161
    %v681 = vunpack.c.l.b16 %v162
    %v682 = vunpack.c.l.b16 %v163
    %v683 = vunpack.c.l.b16 %v164
    %v684 = vunpack.c.l.b16 %v165
    %v685 = vunpack.c.l.b16 %v166
    %v686 = vunpack.c.l.b16 %v167
    %v687 = vunpack.c.l.b16 %v168
    %v688 = vunpack.c.l.b16 %v169
    %v689 = vunpack.c.l.b16 %v170
    %v690 = vunpack.c.l.b16 %v171
    %v691 = vunpack.c.l.b16 %v172
    %v692 = vunpack.c.l.b16 %v173
    %v693 = vunpack.c.l.b16 %v174
    %v694 = vunpack.c.l.b16 %v175
    %v695 = vunpack.c.l.b16 %v176
    %v696 = vunpack.c.l.b16 %v177
    %v697 = vunpack.c.l.b16 %v178
    %v698 = vunpack.c.l.b16 %v179
    %v699 = vunpack.c.l.b16 %v180
    %v700 = vunpack.c.l.b16 %v181
    %v701 = vunpack.c.l.b16 %v182
    %v702 = vunpack.c.l.b16 %v183
    %v703 = vunpack.c.l.b16 %v184
    %v704 = vunpack.c.l.b16 %v185
    %v705 = vunpack.c.l.b16 %v186
    %v706 = vunpack.c.l.b16 %v187
    %v707 = vunpack.c.l.b16 %v188
    %v708 = vunpack.c.l.b16 %v189
    %v709 = vunpack.c.l.b16 %v190
    %v710 = vunpack.c.l.b16 %v191
    %v711 = vunpack.c.l.b16 %v192
    %v712 = vunpack.c.l.b16 %v193
    %v713 = vunpack.c.l.b16 %v194
    %v714 = vunpack.c.l.b16 %v195
    %v715 = vunpack.c.l.b16 %v196
    %v716 = vunpack.c.l.b16 %v197
    %v717 = vunpack.c.l.b16 %v198
    %v718 = vunpack.c.l.b16 %v199
    %v719 = vunpack.c.l.b16 %v200
    %v720 = vunpack.c.l.b16 %v201
    %v721 = vunpack.c.l.b16 %v202
    %v722 = vunpack.c.l.b16 %v203
    %v723 = vunpack.c.l.b16 %v204
    %v724 = vunpack.c.l.b16 %v205
    %v725 = vunpack.c.l.b16 %v206
    %v726 = vunpack.c.l.b16 %v207
    %v727 = vunpack.c.l.b16 %v208
    %v728 = vunpack.c.l.b16 %v209
    %v729 = vunpack.c.l.b16 %v210
    %v730 = vunpack.c.l.b16 %v211
    %v731 = vunpack.c.l.b16 %v212
    %v732 = vunpack.c.l.b16 %v213
    %v733 = vunpack.c.l.b16 %v214
    %v734 = vunpack.c.l.b16 %v215
    %v735 = vunpack.c.l.b16 %v216
    %v736 = vunpack.c.l.b16 %v217
    %v737 = vunpack.c.l.b16 %v218
    %v738 = vunpack.c.l.b16 %v219
    %v739 = vunpack.c.l.b16 %v220
    %v740 = vunpack.c.l.b16 %v221
    %v741 = vunpack.c.l.b16 %v222
    %v742 = vunpack.c.l.b16 %v223
    %v743 = vunpack.c.l.b16 %v224
    %v744 = vunpack.c.l.b16 %v225
    %v745 = vunpack.c.l.b16 %v226
    %v746 = vunpack.c.l.b16 %v227
    %v747 = vunpack.c.l.b16 %v228
    %v748 = vunpack.c.l.b16 %v229
    %v749 = vunpack.c.l.b16 %v230
    %v750 = vunpack.c.l.b16 %v231
    %v751 = vunpack.c.l.b16 %v232
    %v752 = vunpack.c.l.b16 %v233
    %v753 = vunpack.c.l.b16 %v234
    %v754 = vunpack.c.l.b16 %v235
    %v755 = vunpack.c.l.b16 %v236
    %v756 = vunpack.c.l.b16 %v237
    %v757 = vunpack.c.l.b16 %v238
    %v758 = vunpack.c.l.b16 %v239
    %v759 = vunpack.c.l.b16 %v240
    %v760 = vunpack.c.l.b16 %v241
    %v761 = vunpack.c.l.b16 %v242
    %v762 = vunpack.c.l.b16 %v243
    %v763 = vunpack.c.l.b16 %v244
    %v764 = vunpack.c.l.b16 %v245
    %v765 = vunpack.c.l.b16 %v246
    %v766 = vunpack.c.l.b16 %v247
    %v767 = vunpack.c.l.b16 %v248
    %v768 = vunpack.c.l.b16 %v249
    %v769 = vunpack.c.l.b16 %v250
    %v770 = vunpack.c.l.b16 %v251
    %v771 = vunpack.c.l.b16 %v252
    %v772 = vunpack.c.l.b16 %v253
    %v773 = vunpack.c.l.b16 %v254
    %v774 = vunpack.c.l.b16 %v255
    %v775 = vunpack.c.l.b16 %v256
    %v776 = vunpack.c.l.b16 %v257
    %v777 = vunpack.c.l.b16 %v258
    %v778 = vunpack.c.l.b16 %v259
    %v779 = vunpack.c.l.b16 %v260
    %v780 = vunpack.c.l.b16 %v261
    %v781 = vunpack.c.l.b16 %v262
    %v782 = vunpack.c.l.b16 %v263
    %v783 = vunpack.c.l.b16 %v264
    %v784 = vunpack.c.l.b16 %v265
    %v785 = vunpack.c.l.b16 %v266
    %v786 = vunpack.c.l.b16 %v267
    %v787 = vunpack.c.l.b16 %v268
    %v788 = vunpack.c.l.b16 %v269
    %v789 = vunpack.c.l.b16 %v270
    %v790 = vunpack.c.l.b16 %v271
    %v791 = vunpack.c.l.b16 %v272
    %v792 = vunpack.c.l.b16 %v273
    %v793 = vunpack.c.l.b16 %v274
    %v794 = vunpack.c.l.b16 %v275
    %v795 = vunpack.c.l.b16 %v276
    %v796 = vunpack.c.l.b16 %v277
    %v797 = vunpack.c.l.b16 %v278
    %v798 = vunpack.c.l.b16 %v279
    %v799 = vunpack.c.l.b16 %v280
    %v800 = vunpack.c.l.b16 %v281
    %v801 = vunpack.c.l.b16 %v282
    %v802 = vunpack.c.l.b16 %v283
    %v803 = vunpack.c.l.b16 %v284
    %v804 = vunpack.c.l.b16 %v285
    %v805 = vunpack.c.l.b16 %v286
    %v806 = vunpack.c.l.b16 %v287
    %v807 = vunpack.c.l.b16 %v288
    %v808 = vunpack.c.l.b16 %v289
    %v809 = vunpack.c.l.b16 %v290
    %v810 = vunpack.c.l.b16 %v291
    %v811 = vunpack.c.l.b16 %v292
    %v812 = vunpack.c.l.b16 %v293
    %v813 = vunpack.c.l.b16 %v294
    %v814 = vunpack.c.l.b16 %v295
    %v815 = vunpack.c.l.b16 %v296
    %v816 = vunpack.c.l.b16 %v297
    %v817 = vunpack.c.l.b16 %v298
    %v818 = vunpack.c.l.b16 %v299
    %v819 = vunpack.c.l.b16 %v300
    %v820 = vunpack.c.l.b16 %v301
    %v821 = vunpack.c.l.b16 %v302
    %v822 = vunpack.c.l.b16 %v303
    %v823 = vunpack.c.l.b16 %v304
    %v824 = vunpack.c.l.b16 %v305
    %v825 = vunpack.c.l.b16 %v306
    %v826 = vunpack.c.l.b16 %v307
    %v827 = vunpack.c.l.b16 %v308
    %v828 = vunpack.c.l.b16 %v309
    %v829 = vunpack.c.l.b16 %v310
    %v830 = vunpack.c.l.b16 %v311
    %v831 = vunpack.c.l.b16 %v312
    %v832 = vunpack.c.l.b16 %v313
    %v833 = vunpack.c.l.b16 %v314
    %v834 = vunpack.c.l.b16 %v315
    %v835 = vunpack.c.l.b16 %v316
    %v836 = vunpack.c.l.b16 %v317
    %v837 = vunpack.c.l.b16 %v318
    %v838 = vunpack.c.l.b16 %v319
    %v839 = vunpack.c.l.b16 %v320
    %v840 = vunpack.c.l.b16 %v321
    %v841 = vunpack.c.l.b16 %v322
    %v842 = vunpack.c.l.b16 %v323
    %v843 = vunpack.c.l.b16 %v324
    %v844 = vunpack.c.l.b16 %v325
    %v845 = vunpack.c.l.b16 %v326
    %v846 = vunpack.c.l.b16 %v327
    %v847 = vunpack.c.l.b16 %v328
    %v848 = vunpack.c.l.b16 %v329
    %v849 = vunpack.c.l.b16 %v330
    %v850 = vunpack.c.l.b16 %v331
    %v851 = vunpack.c.l.b16 %v332
    %v852 = vunpack.c.l.b16 %v333
    %v853 = vunpack.c.l.b16 %v334
    %v854 = vunpack.c.l.b16 %v335
    %v855 = vunpack.c.l.b16 %v336
    %v856 = vunpack.c.l.b16 %v337
    %v857 = vunpack.c.l.b16 %v338
    %v858 = vunpack.c.l.b16 %v339
    %v859 = vunpack.c.l.b16 %v340
    %v860 = vunpack.c.l.b16 %v341
    %v861 = vunpack.c.l.b16 %v342
    %v862 = vunpack.c.l.b16 %v343
    %v863 = vunpack.c.l.b16 %v344
    %v864 = vunpack.c.l.b16 %v345
    %v865 = vunpack.c.l.b16 %v346
    %v866 = vunpack.c.l.b16 %v347
    %v867 = vpack.c.b16 %v612, %v611
    %v868 = vpack.c.b16 %v614, %v613
    %v869 = vpack.c.b16 %v616, %v615
    %v870 = vpack.c.b16 %v618, %v617
    %v871 = vpack.c.b16 %v620, %v619
    %v872 = vpack.c.b16 %v622, %v621
    %v873 = vpack.c.b16 %v624, %v623
    %v874 = vpack.c.b16 %v626, %v625
    %v875 = vpack.c.b16 %v628, %v627
    %v876 = vpack.c.b16 %v630, %v629
    %v877 = vpack.c.b16 %v632, %v631
    %v878 = vpack.c.b16 %v634, %v633
    %v879 = vpack.c.b16 %v636, %v635
    %v880 = vpack.c.b16 %v638, %v637
    %v881 = vpack.c.b16 %v640, %v639
    %v882 = vpack.c.b16 %v642, %v641
    %v883 = vpack.c.b16 %v644, %v643
    %v884 = vpack.c.b16 %v646, %v645
    %v885 = vpack.c.b16 %v648, %v647
    %v886 = vpack.c.b16 %v650, %v649
    %v887 = vpack.c.b16 %v652, %v651
    %v888 = vpack.c.b16 %v654, %v653
    %v889 = vpack.c.b16 %v656, %v655
    %v890 = vpack.c.b16 %v658, %v657
    %v891 = vpack.c.b16 %v660, %v659
    %v892 = vpack.c.b16 %v662, %v661
    %v893 = vpack.c.b16 %v664, %v663
    %v894 = vpack.c.b16 %v666, %v665
    %v895 = vpack.c.b16 %v668, %v667
    %v896 = vpack.c.b16 %v670, %v669
    %v897 = vpack.c.b16 %v672, %v671
    %v898 = vpack.c.b16 %v674, %v673
    %v899 = vpack.c.b16 %v676, %v675
    %v900 = vpack.c.b16 %v678, %v677
    %v901 = vpack.c.b16 %v680, %v679
    %v902 = vpack.c.b16 %v682, %v681
    %v903 = vpack.c.b16 %v684, %v683
    %v904 = vpack.c.b16 %v686, %v685
    %v905 = vpack.c.b16 %v688, %v687
    %v906 = vpack.c.b16 %v690, %v689
    %v907 = vpack.c.b16 %v692, %v691
    %v908 = vpack.c.b16 %v694, %v693
    %v909 = vpack.c.b16 %v696, %v695
    %v910 = vpack.c.b16 %v698, %v697
    %v911 = vpack.c.b16 %v700, %v699
    %v912 = vpack.c.b16 %v702, %v701
    %v913 = vpack.c.b16 %v704, %v703
    %v914 = vpack.c.b16 %v706, %v705
    %v915 = vpack.c.b16 %v708, %v707
    %v916 = vpack.c.b16 %v710, %v709
    %v917 = vpack.c.b16 %v712, %v711
    %v918 = vpack.c.b16 %v714, %v713
    %v919 = vpack.c.b16 %v716, %v715
    %v920 = vpack.c.b16 %v718, %v717
    %v921 = vpack.c.b16 %v720, %v719
    %v922 = vpack.c.b16 %v722, %v721
    %v923 = vpack.c.b16 %v724, %v723
    %v924 = vpack.c.b16 %v726, %v725
    %v925 = vpack.c.b16 %v728, %v727
    %v926 = vpack.c.b16 %v730, %v729
    %v927 = vpack.c.b16 %v732, %v731
    %v928 = vpack.c.b16 %v734, %v733
    %v929 = vpack.c.b16 %v736, %v735
    %v930 = vpack.c.b16 %v738, %v737
    %v931 = vpack.c.b16 %v740, %v739
    %v932 = vpack.c.b16 %v742, %v741
    %v933 = vpack.c.b16 %v744, %v743
    %v934 = vpack.c.b16 %v746, %v745
    %v935 = vpack.c.b16 %v748, %v747
    %v936 = vpack.c.b16 %v750, %v749
    %v937 = vpack.c.b16 %v752, %v751
    %v938 = vpack.c.b16 %v754, %v753
    %v939 = vpack.c.b16 %v756, %v755
    %v940 = vpack.c.b16 %v758, %v757
    %v941 = vpack.c.b16 %v760, %v759
    %v942 = vpack.c.b16 %v762, %v761
    %v943 = vpack.c.b16 %v764, %v763
    %v944 = vpack.c.b16 %v766, %v765
    %v945 = vpack.c.b16 %v768, %v767
    %v946 = vpack.c.b16 %v770, %v769
    %v947 = vpack.c.b16 %v772, %v771
    %v948 = vpack.c.b16 %v774, %v773
    %v949 = vpack.c.b16 %v776, %v775
    %v950 = vpack.c.b16 %v778, %v777
    %v951 = vpack.c.b16 %v780, %v779
    %v952 = vpack.c.b16 %v782, %v781
    %v953 = vpack.c.b16 %v784, %v783
    %v954 = vpack.c.b16 %v786, %v785
    %v955 = vpack.c.b16 %v788, %v787
    %v956 = vpack.c.b16 %v790, %v789
    %v957 = vpack.c.b16 %v792, %v791
    %v958 = vpack.c.b16 %v794, %v793
    %v959 = vpack.c.b16 %v796, %v795
    %v960 = vpack.c.b16 %v798, %v797
    %v961 = vpack.c.b16 %v800, %v799
    %v962 = vpack.c.b16 %v802, %v801
    %v963 = vpack.c.b16 %v804, %v803
    %v964 = vpack.c.b16 %v806, %v805
    %v965 = vpack.c.b16 %v808, %v807
    %v966 = vpack.c.b16 %v810, %v809
    %v967 = vpack.c.b16 %v812, %v811
    %v968 = vpack.c.b16 %v814, %v813
    %v969 = vpack.c.b16 %v816, %v815
    %v970 = vpack.c.b16 %v818, %v817
    %v971 = vpack.c.b16 %v820, %v819
    %v972 = vpack.c.b16 %v822, %v821
    %v973 = vpack.c.b16 %v824, %v823
    %v974 = vpack.c.b16 %v826, %v825
    %v975 = vpack.c.b16 %v828, %v827
    %v976 = vpack.c.b16 %v830, %v829
    %v977 = vpack.c.b16 %v832, %v831
    %v978 = vpack.c.b16 %v834, %v833
    %v979 = vpack.c.b16 %v836, %v835
    %v980 = vpack.c.b16 %v838, %v837
    %v981 = vpack.c.b16 %v840, %v839
    %v982 = vpack.c.b16 %v842, %v841
    %v983 = vpack.c.b16 %v844, %v843
    %v984 = vpack.c.b16 %v846, %v845
    %v985 = vpack.c.b16 %v848, %v847
    %v986 = vpack.c.b16 %v850, %v849
    %v987 = vpack.c.b16 %v852, %v851
    %v988 = vpack.c.b16 %v854, %v853
    %v989 = vpack.c.b16 %v856, %v855
    %v990 = vpack.c.b16 %v858, %v857
    %v991 = vpack.c.b16 %v860, %v859
    %v992 = vpack.c.b16 %v862, %v861
    %v993 = vpack.c.b16 %v864, %v863
    %v994 = vpack.c.b16 %v866, %v865
    %1123 = vmatprep.subr.bf16.mxu0 0
    %1124 = vmatpush1.bf16.msra.mxu0 %v867
    %1125 = vmatprep.subr.bf16.mxu0 0
    %1126 = vmatpush1.bf16.msra.mxu0 %v868
    %1127 = vmatprep.subr.bf16.mxu0 0
    %1128 = vmatpush1.bf16.msra.mxu0 %v869
    %1129 = vmatprep.subr.bf16.mxu0 0
    %1130 = vmatpush1.bf16.msra.mxu0 %v870
    %1131 = vmatprep.subr.bf16.mxu0 0
    %1132 = vmatpush1.bf16.msra.mxu0 %v871
    %1133 = vmatprep.subr.bf16.mxu0 0
    %1134 = vmatpush1.bf16.msra.mxu0 %v872
    %1135 = vmatprep.subr.bf16.mxu0 0
    %1136 = vmatpush1.bf16.msra.mxu0 %v873
    %1137 = vmatprep.subr.bf16.mxu0 0
    %1138 = vmatpush1.bf16.msra.mxu0 %v874
    %1139 = vmatprep.subr.bf16.mxu0 0
    %1140 = vmatpush1.bf16.msra.mxu0 %v875
    %1141 = vmatprep.subr.bf16.mxu0 0
    %1142 = vmatpush1.bf16.msra.mxu0 %v876
    %1143 = vmatprep.subr.bf16.mxu0 0
    %1144 = vmatpush1.bf16.msra.mxu0 %v877
    %1145 = vmatprep.subr.bf16.mxu0 0
    %1146 = vmatpush1.bf16.msra.mxu0 %v878
    %1147 = vmatprep.subr.bf16.mxu0 0
    %1148 = vmatpush1.bf16.msra.mxu0 %v879
    %1149 = vmatprep.subr.bf16.mxu0 0
    %1150 = vmatpush1.bf16.msra.mxu0 %v880
    %1151 = vmatprep.subr.bf16.mxu0 0
    %1152 = vmatpush1.bf16.msra.mxu0 %v881
    %1153 = vmatprep.subr.bf16.mxu0 0
    %1154 = vmatpush1.bf16.msra.mxu0 %v882
    %1155 = vmatprep.mubr.bf16.mxu0 %v77
    %1156 = vmatmul.mubr.bf16.gmra.mrb[0].mxu0 %v76
    %v1157 = vpop.f32.mrb[0].mxu0
    %v1158 = vadd.f32 %v353, %v1157
    %v1159 = vpop.f32.mrb[0].mxu0
    %v1160 = vpop.f32.mrb[0].mxu0
    %v1161 = vpop.f32.mrb[0].mxu0
    %1162 = vdwg.mxu0
    %1163 = vmatprep.subr.bf16.mxu0 0
    %1164 = vmatpush1.bf16.msra.mxu0 %v883
    %1165 = vmatprep.subr.bf16.mxu0 0
    %1166 = vmatpush1.bf16.msra.mxu0 %v884
    %1167 = vmatprep.subr.bf16.mxu0 0
    %1168 = vmatpush1.bf16.msra.mxu0 %v885
    %1169 = vmatprep.subr.bf16.mxu0 0
    %1170 = vmatpush1.bf16.msra.mxu0 %v886
    %1171 = vmatprep.subr.bf16.mxu0 0
    %1172 = vmatpush1.bf16.msra.mxu0 %v887
    %1173 = vmatprep.subr.bf16.mxu0 0
    %1174 = vmatpush1.bf16.msra.mxu0 %v888
    %1175 = vmatprep.subr.bf16.mxu0 0
    %1176 = vmatpush1.bf16.msra.mxu0 %v889
    %1177 = vmatprep.subr.bf16.mxu0 0
    %1178 = vmatpush1.bf16.msra.mxu0 %v890
    %1179 = vmatprep.subr.bf16.mxu0 0
    %1180 = vmatpush1.bf16.msra.mxu0 %v891
    %1181 = vmatprep.subr.bf16.mxu0 0
    %1182 = vmatpush1.bf16.msra.mxu0 %v892
    %1183 = vmatprep.subr.bf16.mxu0 0
    %1184 = vmatpush1.bf16.msra.mxu0 %v893
    %1185 = vmatprep.subr.bf16.mxu0 0
    %1186 = vmatpush1.bf16.msra.mxu0 %v894
    %1187 = vmatprep.subr.bf16.mxu0 0
    %1188 = vmatpush1.bf16.msra.mxu0 %v895
    %1189 = vmatprep.subr.bf16.mxu0 0
    %1190 = vmatpush1.bf16.msra.mxu0 %v896
    %1191 = vmatprep.subr.bf16.mxu0 0
    %1192 = vmatpush1.bf16.msra.mxu0 %v897
    %1193 = vmatprep.subr.bf16.mxu0 0
    %1194 = vmatpush1.bf16.msra.mxu0 %v898
    %1195 = vmatprep.mubr.bf16.mxu0 %v79
    %1196 = vmatmul.mubr.bf16.gmra.mrb[0].mxu0 %v78
    %v1197 = vpop.f32.mrb[0].mxu0
    %v1198 = vadd.f32 %v1158, %v1197
    %v1199 = vpop.f32.mrb[0].mxu0
    %v1200 = vpop.f32.mrb[0].mxu0
    %v1201 = vpop.f32.mrb[0].mxu0
    %1202 = vdwg.mxu0
    %1203 = vmatprep.subr.bf16.mxu0 0
    %1204 = vmatpush1.bf16.msra.mxu0 %v899
    %1205 = vmatprep.subr.bf16.mxu0 0
    %1206 = vmatpush1.bf16.msra.mxu0 %v900
    %1207 = vmatprep.subr.bf16.mxu0 0
    %1208 = vmatpush1.bf16.msra.mxu0 %v901
    %1209 = vmatprep.subr.bf16.mxu0 0
    %1210 = vmatpush1.bf16.msra.mxu0 %v902
    %1211 = vmatprep.subr.bf16.mxu0 0
    %1212 = vmatpush1.bf16.msra.mxu0 %v903
    %1213 = vmatprep.subr.bf16.mxu0 0
    %1214 = vmatpush1.bf16.msra.mxu0 %v904
    %1215 = vmatprep.subr.bf16.mxu0 0
    %1216 = vmatpush1.bf16.msra.mxu0 %v905
    %1217 = vmatprep.subr.bf16.mxu0 0
    %1218 = vmatpush1.bf16.msra.mxu0 %v906
    %1219 = vmatprep.subr.bf16.mxu0 0
    %1220 = vmatpush1.bf16.msra.mxu0 %v907
    %1221 = vmatprep.subr.bf16.mxu0 0
    %1222 = vmatpush1.bf16.msra.mxu0 %v908
    %1223 = vmatprep.subr.bf16.mxu0 0
    %1224 = vmatpush1.bf16.msra.mxu0 %v909
    %1225 = vmatprep.subr.bf16.mxu0 0
    %1226 = vmatpush1.bf16.msra.mxu0 %v910
    %1227 = vmatprep.subr.bf16.mxu0 0
    %1228 = vmatpush1.bf16.msra.mxu0 %v911
    %1229 = vmatprep.subr.bf16.mxu0 0
    %1230 = vmatpush1.bf16.msra.mxu0 %v912
    %1231 = vmatprep.subr.bf16.mxu0 0
    %1232 = vmatpush1.bf16.msra.mxu0 %v913
    %1233 = vmatprep.subr.bf16.mxu0 0
    %1234 = vmatpush1.bf16.msra.mxu0 %v914
    %1235 = vmatprep.mubr.bf16.mxu0 %v81
    %1236 = vmatmul.mubr.bf16.gmra.mrb[0].mxu0 %v80
    %v1237 = vpop.f32.mrb[0].mxu0
    %v1238 = vadd.f32 %v1198, %v1237
    %v1239 = vpop.f32.mrb[0].mxu0
    %v1240 = vpop.f32.mrb[0].mxu0
    %v1241 = vpop.f32.mrb[0].mxu0
    %1242 = vdwg.mxu0
    %1243 = vmatprep.subr.bf16.mxu0 0
    %1244 = vmatpush1.bf16.msra.mxu0 %v915
    %1245 = vmatprep.subr.bf16.mxu0 0
    %1246 = vmatpush1.bf16.msra.mxu0 %v916
    %1247 = vmatprep.subr.bf16.mxu0 0
    %1248 = vmatpush1.bf16.msra.mxu0 %v917
    %1249 = vmatprep.subr.bf16.mxu0 0
    %1250 = vmatpush1.bf16.msra.mxu0 %v918
    %1251 = vmatprep.subr.bf16.mxu0 0
    %1252 = vmatpush1.bf16.msra.mxu0 %v919
    %1253 = vmatprep.subr.bf16.mxu0 0
    %1254 = vmatpush1.bf16.msra.mxu0 %v920
    %1255 = vmatprep.subr.bf16.mxu0 0
    %1256 = vmatpush1.bf16.msra.mxu0 %v921
    %1257 = vmatprep.subr.bf16.mxu0 0
    %1258 = vmatpush1.bf16.msra.mxu0 %v922
    %1259 = vmatprep.subr.bf16.mxu0 0
    %1260 = vmatpush1.bf16.msra.mxu0 %v923
    %1261 = vmatprep.subr.bf16.mxu0 0
    %1262 = vmatpush1.bf16.msra.mxu0 %v924
    %1263 = vmatprep.subr.bf16.mxu0 0
    %1264 = vmatpush1.bf16.msra.mxu0 %v925
    %1265 = vmatprep.subr.bf16.mxu0 0
    %1266 = vmatpush1.bf16.msra.mxu0 %v926
    %1267 = vmatprep.subr.bf16.mxu0 0
    %1268 = vmatpush1.bf16.msra.mxu0 %v927
    %1269 = vmatprep.subr.bf16.mxu0 0
    %1270 = vmatpush1.bf16.msra.mxu0 %v928
    %1271 = vmatprep.subr.bf16.mxu0 0
    %1272 = vmatpush1.bf16.msra.mxu0 %v929
    %1273 = vmatprep.subr.bf16.mxu0 0
    %1274 = vmatpush1.bf16.msra.mxu0 %v930
    %1275 = vmatprep.mubr.bf16.mxu0 %v83
    %1276 = vmatmul.mubr.bf16.gmra.mrb[0].mxu0 %v82
    %v1277 = vpop.f32.mrb[0].mxu0
    %v1278 = vadd.f32 %v1238, %v1277
    %v1279 = vpop.f32.mrb[0].mxu0
    %v1280 = vpop.f32.mrb[0].mxu0
    %v1281 = vpop.f32.mrb[0].mxu0
    %1282 = vdwg.mxu0
    %1283 = vmatprep.subr.bf16.mxu0 0
    %1284 = vmatpush1.bf16.msra.mxu0 %v931
    %1285 = vmatprep.subr.bf16.mxu0 0
    %1286 = vmatpush1.bf16.msra.mxu0 %v932
    %1287 = vmatprep.subr.bf16.mxu0 0
    %1288 = vmatpush1.bf16.msra.mxu0 %v933
    %1289 = vmatprep.subr.bf16.mxu0 0
    %1290 = vmatpush1.bf16.msra.mxu0 %v934
    %1291 = vmatprep.subr.bf16.mxu0 0
    %1292 = vmatpush1.bf16.msra.mxu0 %v935
    %1293 = vmatprep.subr.bf16.mxu0 0
    %1294 = vmatpush1.bf16.msra.mxu0 %v936
    %1295 = vmatprep.subr.bf16.mxu0 0
    %1296 = vmatpush1.bf16.msra.mxu0 %v937
    %1297 = vmatprep.subr.bf16.mxu0 0
    %1298 = vmatpush1.bf16.msra.mxu0 %v938
    %1299 = vmatprep.subr.bf16.mxu0 0
    %1300 = vmatpush1.bf16.msra.mxu0 %v939
    %1301 = vmatprep.subr.bf16.mxu0 0
    %1302 = vmatpush1.bf16.msra.mxu0 %v940
    %1303 = vmatprep.subr.bf16.mxu0 0
    %1304 = vmatpush1.bf16.msra.mxu0 %v941
    %1305 = vmatprep.subr.bf16.mxu0 0
    %1306 = vmatpush1.bf16.msra.mxu0 %v942
    %1307 = vmatprep.subr.bf16.mxu0 0
    %1308 = vmatpush1.bf16.msra.mxu0 %v943
    %1309 = vmatprep.subr.bf16.mxu0 0
    %1310 = vmatpush1.bf16.msra.mxu0 %v944
    %1311 = vmatprep.subr.bf16.mxu0 0
    %1312 = vmatpush1.bf16.msra.mxu0 %v945
    %1313 = vmatprep.subr.bf16.mxu0 0
    %1314 = vmatpush1.bf16.msra.mxu0 %v946
    %1315 = vmatprep.mubr.bf16.mxu0 %v85
    %1316 = vmatmul.mubr.bf16.gmra.mrb[0].mxu0 %v84
    %v1317 = vpop.f32.mrb[0].mxu0
    %v1318 = vadd.f32 %v1278, %v1317
    %v1319 = vpop.f32.mrb[0].mxu0
    %v1320 = vpop.f32.mrb[0].mxu0
    %v1321 = vpop.f32.mrb[0].mxu0
    %1322 = vdwg.mxu0
    %1323 = vmatprep.subr.bf16.mxu0 0
    %1324 = vmatpush1.bf16.msra.mxu0 %v947
    %1325 = vmatprep.subr.bf16.mxu0 0
    %1326 = vmatpush1.bf16.msra.mxu0 %v948
    %1327 = vmatprep.subr.bf16.mxu0 0
    %1328 = vmatpush1.bf16.msra.mxu0 %v949
    %1329 = vmatprep.subr.bf16.mxu0 0
    %1330 = vmatpush1.bf16.msra.mxu0 %v950
    %1331 = vmatprep.subr.bf16.mxu0 0
    %1332 = vmatpush1.bf16.msra.mxu0 %v951
    %1333 = vmatprep.subr.bf16.mxu0 0
    %1334 = vmatpush1.bf16.msra.mxu0 %v952
    %1335 = vmatprep.subr.bf16.mxu0 0
    %1336 = vmatpush1.bf16.msra.mxu0 %v953
    %1337 = vmatprep.subr.bf16.mxu0 0
    %1338 = vmatpush1.bf16.msra.mxu0 %v954
    %1339 = vmatprep.subr.bf16.mxu0 0
    %1340 = vmatpush1.bf16.msra.mxu0 %v955
    %1341 = vmatprep.subr.bf16.mxu0 0
    %1342 = vmatpush1.bf16.msra.mxu0 %v956
    %1343 = vmatprep.subr.bf16.mxu0 0
    %1344 = vmatpush1.bf16.msra.mxu0 %v957
    %1345 = vmatprep.subr.bf16.mxu0 0
    %1346 = vmatpush1.bf16.msra.mxu0 %v958
    %1347 = vmatprep.subr.bf16.mxu0 0
    %1348 = vmatpush1.bf16.msra.mxu0 %v959
    %1349 = vmatprep.subr.bf16.mxu0 0
    %1350 = vmatpush1.bf16.msra.mxu0 %v960
    %1351 = vmatprep.subr.bf16.mxu0 0
    %1352 = vmatpush1.bf16.msra.mxu0 %v961
    %1353 = vmatprep.subr.bf16.mxu0 0
    %1354 = vmatpush1.bf16.msra.mxu0 %v962
    %1355 = vmatprep.mubr.bf16.mxu0 %v87
    %1356 = vmatmul.mubr.bf16.gmra.mrb[0].mxu0 %v86
    %v1357 = vpop.f32.mrb[0].mxu0
    %v1358 = vadd.f32 %v1318, %v1357
    %v1359 = vpop.f32.mrb[0].mxu0
    %v1360 = vpop.f32.mrb[0].mxu0
    %v1361 = vpop.f32.mrb[0].mxu0
    %1362 = vdwg.mxu0
    %1363 = vmatprep.subr.bf16.mxu0 0
    %1364 = vmatpush1.bf16.msra.mxu0 %v963
    %1365 = vmatprep.subr.bf16.mxu0 0
    %1366 = vmatpush1.bf16.msra.mxu0 %v964
    %1367 = vmatprep.subr.bf16.mxu0 0
    %1368 = vmatpush1.bf16.msra.mxu0 %v965
    %1369 = vmatprep.subr.bf16.mxu0 0
    %1370 = vmatpush1.bf16.msra.mxu0 %v966
    %1371 = vmatprep.subr.bf16.mxu0 0
    %1372 = vmatpush1.bf16.msra.mxu0 %v967
    %1373 = vmatprep.subr.bf16.mxu0 0
    %1374 = vmatpush1.bf16.msra.mxu0 %v968
    %1375 = vmatprep.subr.bf16.mxu0 0
    %1376 = vmatpush1.bf16.msra.mxu0 %v969
    %1377 = vmatprep.subr.bf16.mxu0 0
    %1378 = vmatpush1.bf16.msra.mxu0 %v970
    %1379 = vmatprep.subr.bf16.mxu0 0
    %1380 = vmatpush1.bf16.msra.mxu0 %v971
    %1381 = vmatprep.subr.bf16.mxu0 0
    %1382 = vmatpush1.bf16.msra.mxu0 %v972
    %1383 = vmatprep.subr.bf16.mxu0 0
    %1384 = vmatpush1.bf16.msra.mxu0 %v973
    %1385 = vmatprep.subr.bf16.mxu0 0
    %1386 = vmatpush1.bf16.msra.mxu0 %v974
    %1387 = vmatprep.subr.bf16.mxu0 0
    %1388 = vmatpush1.bf16.msra.mxu0 %v975
    %1389 = vmatprep.subr.bf16.mxu0 0
    %1390 = vmatpush1.bf16.msra.mxu0 %v976
    %1391 = vmatprep.subr.bf16.mxu0 0
    %1392 = vmatpush1.bf16.msra.mxu0 %v977
    %1393 = vmatprep.subr.bf16.mxu0 0
    %1394 = vmatpush1.bf16.msra.mxu0 %v978
    %1395 = vmatprep.mubr.bf16.mxu0 %v89
    %1396 = vmatmul.mubr.bf16.gmra.mrb[0].mxu0 %v88
    %v1397 = vpop.f32.mrb[0].mxu0
    %v1398 = vadd.f32 %v1358, %v1397
    %v1399 = vpop.f32.mrb[0].mxu0
    %v1400 = vpop.f32.mrb[0].mxu0
    %v1401 = vpop.f32.mrb[0].mxu0
    %1402 = vdwg.mxu0
    %1403 = vmatprep.subr.bf16.mxu0 0
    %1404 = vmatpush1.bf16.msra.mxu0 %v979
    %1405 = vmatprep.subr.bf16.mxu0 0
    %1406 = vmatpush1.bf16.msra.mxu0 %v980
    %1407 = vmatprep.subr.bf16.mxu0 0
    %1408 = vmatpush1.bf16.msra.mxu0 %v981
    %1409 = vmatprep.subr.bf16.mxu0 0
    %1410 = vmatpush1.bf16.msra.mxu0 %v982
    %1411 = vmatprep.subr.bf16.mxu0 0
    %1412 = vmatpush1.bf16.msra.mxu0 %v983
    %1413 = vmatprep.subr.bf16.mxu0 0
    %1414 = vmatpush1.bf16.msra.mxu0 %v984
    %1415 = vmatprep.subr.bf16.mxu0 0
    %1416 = vmatpush1.bf16.msra.mxu0 %v985
    %1417 = vmatprep.subr.bf16.mxu0 0
    %1418 = vmatpush1.bf16.msra.mxu0 %v986
    %1419 = vmatprep.subr.bf16.mxu0 0
    %1420 = vmatpush1.bf16.msra.mxu0 %v987
    %1421 = vmatprep.subr.bf16.mxu0 0
    %1422 = vmatpush1.bf16.msra.mxu0 %v988
    %1423 = vmatprep.subr.bf16.mxu0 0
    %1424 = vmatpush1.bf16.msra.mxu0 %v989
    %1425 = vmatprep.subr.bf16.mxu0 0
    %1426 = vmatpush1.bf16.msra.mxu0 %v990
    %1427 = vmatprep.subr.bf16.mxu0 0
    %1428 = vmatpush1.bf16.msra.mxu0 %v991
    %1429 = vmatprep.subr.bf16.mxu0 0
    %1430 = vmatpush1.bf16.msra.mxu0 %v992
    %1431 = vmatprep.subr.bf16.mxu0 0
    %1432 = vmatpush1.bf16.msra.mxu0 %v993
    %1433 = vmatprep.subr.bf16.mxu0 0
    %1434 = vmatpush1.bf16.msra.mxu0 %v994
    %1435 = vmatprep.mubr.bf16.mxu0 %v91
    %1436 = vmatmul.mubr.bf16.gmra.mrb[0].mxu0 %v90
    %v1437 = vpop.f32.mrb[0].mxu0
    %v1438 = vadd.f32 %v1398, %v1437
    %v1439 = vpop.f32.mrb[0].mxu0
    %v1440 = vpop.f32.mrb[0].mxu0
    %v1441 = vpop.f32.mrb[0].mxu0
    %1442 = vdwg.mxu0
    %v1443 = vmax.f32 %v1438, 0.0
    %v1444 = vpack.c.bf16 %v1443, %v1443
    %v1445 = vld [vmem:[#allocation6] sm:$0xf]
    %v1446 = vld [vmem:[#allocation6 + $0x4] sm:$0xf]
    %v1447 = vld [vmem:[#allocation6 + $0x8] sm:$0xf]
    %v1448 = vld [vmem:[#allocation6 + $0xc] sm:$0xf]
    %v1449 = vld [vmem:[#allocation6 + $0x10] sm:$0xf]
    %v1450 = vld [vmem:[#allocation6 + $0x14] sm:$0xf]
    %v1451 = vld [vmem:[#allocation6 + $0x18] sm:$0xf]
    %v1452 = vld [vmem:[#allocation6 + $0x1c] sm:$0xf]
    %v1453 = vld [vmem:[#allocation6 + $0x20] sm:$0xf]
    %v1454 = vld [vmem:[#allocation6 + $0x24] sm:$0xf]
    %v1455 = vld [vmem:[#allocation6 + $0x28] sm:$0xf]
    %v1456 = vld [vmem:[#allocation6 + $0x2c] sm:$0xf]
    %v1457 = vld [vmem:[#allocation6 + $0x30] sm:$0xf]
    %v1458 = vld [vmem:[#allocation6 + $0x34] sm:$0xf]
    %v1459 = vld [vmem:[#allocation6 + $0x38] sm:$0xf]
    %v1460 = vld [vmem:[#allocation6 + $0x3c] sm:$0xf]
    %v1461 = vld [vmem:[%s4] sm:$0x1]
    %v1463 = vlaneseq
    %v1464 = vshrl.u32 %v1463, 7
    %v1465 = vsub.s32 0, %v1464
    %v1466 = vrot.slane %v1461, %v1465
    %v1484 = vunpack.c.l.b16 %v1445
    %v1485 = vunpack.c.l.b16 %v1446
    %v1486 = vunpack.c.l.b16 %v1447
    %v1487 = vunpack.c.l.b16 %v1448
    %v1488 = vunpack.c.l.b16 %v1449
    %v1489 = vunpack.c.l.b16 %v1450
    %v1490 = vunpack.c.l.b16 %v1451
    %v1491 = vunpack.c.l.b16 %v1452
    %v1492 = vunpack.c.l.b16 %v1453
    %v1493 = vunpack.c.l.b16 %v1454
    %v1494 = vunpack.c.l.b16 %v1455
    %v1495 = vunpack.c.l.b16 %v1456
    %v1496 = vunpack.c.l.b16 %v1457
    %v1497 = vunpack.c.l.b16 %v1458
    %v1498 = vunpack.c.l.b16 %v1459
    %v1499 = vunpack.c.l.b16 %v1460
    %v1500 = vpack.c.b16 %v1485, %v1484
    %v1501 = vpack.c.b16 %v1487, %v1486
    %v1502 = vpack.c.b16 %v1489, %v1488
    %v1503 = vpack.c.b16 %v1491, %v1490
    %v1504 = vpack.c.b16 %v1493, %v1492
    %v1505 = vpack.c.b16 %v1495, %v1494
    %v1506 = vpack.c.b16 %v1497, %v1496
    %v1507 = vpack.c.b16 %v1499, %v1498
    %1516 = vmatprep.subr.bf16.mxu0 0
    %1517 = vmatpush1.bf16.msra.mxu0 %v1500
    %1518 = vmatprep.subr.bf16.mxu0 0
    %1519 = vmatpush1.bf16.msra.mxu0 %v1501
    %1520 = vmatprep.subr.bf16.mxu0 0
    %1521 = vmatpush1.bf16.msra.mxu0 %v1502
    %1522 = vmatprep.subr.bf16.mxu0 0
    %1523 = vmatpush1.bf16.msra.mxu0 %v1503
    %1524 = vmatprep.subr.bf16.mxu0 0
    %1525 = vmatpush1.bf16.msra.mxu0 %v1504
    %1526 = vmatprep.subr.bf16.mxu0 0
    %1527 = vmatpush1.bf16.msra.mxu0 %v1505
    %1528 = vmatprep.subr.bf16.mxu0 0
    %1529 = vmatpush1.bf16.msra.mxu0 %v1506
    %1530 = vmatprep.subr.bf16.mxu0 0
    %1531 = vmatpush1.bf16.msra.mxu0 %v1507
    %1532 = vmatprep.subr.bf16.mxu0 0
    %1533 = vmatpush1.bf16.msra.mxu0 0
    %1534 = vmatprep.subr.bf16.mxu0 0
    %1535 = vmatpush1.bf16.msra.mxu0 0
    %1536 = vmatprep.subr.bf16.mxu0 0
    %1537 = vmatpush1.bf16.msra.mxu0 0
    %1538 = vmatprep.subr.bf16.mxu0 0
    %1539 = vmatpush1.bf16.msra.mxu0 0
    %1540 = vmatprep.subr.bf16.mxu0 0
    %1541 = vmatpush1.bf16.msra.mxu0 0
    %1542 = vmatprep.subr.bf16.mxu0 0
    %1543 = vmatpush1.bf16.msra.mxu0 0
    %1544 = vmatprep.subr.bf16.mxu0 0
    %1545 = vmatpush1.bf16.msra.mxu0 0
    %1546 = vmatprep.subr.bf16.mxu0 0
    %1547 = vmatpush1.bf16.msra.mxu0 0
    %1548 = vmatprep.mubr.bf16.mxu0 0
    %1549 = vmatmul.mubr.bf16.gmra.mrb[0].mxu0 %v1444
    %v1550 = vpop.f32.mrb[0].mxu0
    %v1551 = vadd.f32 %v1466, %v1550
    %v1552 = vpop.f32.mrb[0].mxu0
    %v1553 = vpop.f32.mrb[0].mxu0
    %v1554 = vpop.f32.mrb[0].mxu0
    %1555 = vdwg.mxu0
    %v1556 = vmax.f32 %v1551, 0.0
    %v1557 = vlaneseq
    %v1558 = vand.u32 %v1557, 127
    %vm1559 = vcmp.ge.s32.totalorder %v1558, 16
    %vm1560 = vcmp.lt.s32.totalorder %v1558, 32
    %vm1561 = vmand %vm1559, %vm1560
    %v1562 = vsel %vm1561, %v1556, 0.0
    %v1563 = vmul.f32 %v1562, 1.442695
    %v1564 = vpow.pop %v1563
    %v1565 = vadd.f32 %v1564, 1e-09
    %v1566 = vrsqrt.pop %v1565
    %v1567 = vmul.f32 %v1565, %v1566
    %vm1568 = vcmp.eq.f32.partialorder %v1565, inf
    %v1569 = vsel %vm1568, %v1565, %v1567
    %vm1570 = vcmp.eq.f32.partialorder %v1565, 0.0
    %v1571 = vand.u32 %v1565, 2147483648
    %v1572 = vsel %vm1570, %v1571, %v1569
    %v1573 = vsel %vm1561, %v1572, %v1556
    %1574 = vst [vmem:[%s5] sm:$0xff] %v1573
    // Predicated region
    $region34: #{encoder_a_forward.1} parent=1 // pred_check
      _
    $region35: #{encoder_a_forward.1} parent=1 // pred_check_branch
      %1576 = sbr.rel (0) target = $region37
    $region36: #{encoder_a_forward.1} parent=1 // pred_region
      _
    $region37: #{encoder_a_forward.1} parent=1 // pred_fallthru
      _
    // Predicated region
    $region38: #{encoder_a_forward.1} parent=1 // pred_check
      _
    $region39: #{encoder_a_forward.1} parent=1 // pred_check_branch
      %1578 = sbr.rel (0) target = $region41
    $region40: #{encoder_a_forward.1} parent=1 // pred_region
      _
    $region41: #{encoder_a_forward.1} parent=1 // pred_fallthru
      _
    %1579 = vsyncpa [#allocation3], 1
    %1580 = vsyncpa [#allocation5], 1

</llo_original>
